<compile_context>
chip_gen: v6e
topology: v6e:2x2x1
jax: 0.10.0
libtpu: 0.0.40
codegen_flags: <defaults>
</compile_context>

<pallas_src>
import jax
import jax.numpy as jnp
from jax.experimental import pallas as pl
from jax.experimental.pallas import tpu as pltpu

HIDDEN = 64
_LANE = 128
_ROW_TILE = 16            # batch tiles 16-aligned (bf16 sublane tile)
_MIB = 1024 * 1024


def _round_up(a, m):
    return (a + m - 1) // m * m


def _physical_vmem_bytes():
    try:
        info = pltpu.get_tpu_info()
        v = int(getattr(info, "vmem_capacity_bytes", 0))
        if v > 0:
            return v
    except Exception:
        pass
    return 64 * _MIB       # conservative default (v7x-class per-core VMEM)


def _vmem_needed(batch_tile, input_dim, n_pad):
    """Approximate VMEM bytes required for a given batch tile."""
    params = (input_dim * HIDDEN * 2      # w1 (bf16)
              + HIDDEN * 4                # b1 (f32)
              + HIDDEN * n_pad * 2        # w2 (bf16)
              + n_pad * 4)                # b2 (f32)
    tiles = (2 * batch_tile * input_dim * 4    # x tile (f32), double-buffered
             + 2 * batch_tile * n_pad * 2)     # out tile (bf16), double-buffered
    temps = batch_tile * (input_dim * 2        # x cast to bf16
                          + HIDDEN * 4         # h (f32)
                          + HIDDEN * 2         # h cast to bf16
                          + n_pad * 4)         # o (f32) before final cast
    return 2 * params + tiles + temps          # params double-buffered (default)


def _choose_batch_tile(B, input_dim, n_pad, budget_bytes, row_cap):
    """Largest 16-aligned batch tile whose footprint fits the VMEM budget."""
    fixed = 2 * (input_dim * HIDDEN * 2 + HIDDEN * 4
                 + HIDDEN * n_pad * 2 + n_pad * 4)
    per_row = (2 * input_dim * 4 + 2 * n_pad * 2
               + input_dim * 2 + HIDDEN * 6 + n_pad * 4)
    avail = max(budget_bytes - fixed, _ROW_TILE * per_row)
    tile = (avail // per_row // _ROW_TILE) * _ROW_TILE
    return int(max(_ROW_TILE, min(tile, row_cap)))


def _mlp_kernel(x_ref, w1_ref, b1_ref, w2_ref, b2_ref, o_ref):
    # h = relu(x @ W1 + b1): x arrives f32 (single HBM read), cast on the VPU,
    # bf16 MXU matmul with f32 accumulation.
    x_bf = x_ref[...].astype(jnp.bfloat16)
    h = jnp.dot(x_bf, w1_ref[...], preferred_element_type=jnp.float32)
    h = jnp.maximum(h + b1_ref[...], 0.0)
    # o = h @ W2 + b2: single bf16 MXU pass, f32 accumulation, bf16 store.
    o = jnp.dot(h.astype(jnp.bfloat16), w2_ref[...],
                preferred_element_type=jnp.float32) + b2_ref[...]
    o_ref[...] = o.astype(o_ref.dtype)


def adversarial_debiaser_forward(x, w1, b1, w2, b2, *, batch_tile=None):
    """x: [B, input_dim] f32; w1: [input_dim, 64]; b1: [1, 64] (or [64]);
    w2: [64, sensitive_dim]; b2: [1, sensitive_dim] (or [sensitive_dim]).
    Returns [B, sensitive_dim] f32."""
    B, input_dim = x.shape
    sensitive_dim = w2.shape[1]
    n_pad = _round_up(max(sensitive_dim, _LANE), _LANE)   # lane-dense output

    phys = _physical_vmem_bytes()
    vmem_cap = (phys * 3) // 4          # scoped-VMEM ceiling we request
    budget = (vmem_cap * 7) // 8        # tile-sizing budget (headroom under cap)
    row_cap = 1024 if phys <= 64 * _MIB else 2048

    if batch_tile is None:
        batch_tile = _choose_batch_tile(B, input_dim, n_pad, budget, row_cap)
    batch_tile = max(_ROW_TILE, _round_up(int(batch_tile), _ROW_TILE))
    batch_tile = min(batch_tile, _round_up(B, _ROW_TILE))

    # v7x-class chips (<=64 MiB VMEM, 2 TensorCores): keep >=2 "parallel" grid
    # steps for mid/large batches so both cores get work.
    if phys <= 64 * _MIB and B >= 2 * _ROW_TILE and pl.cdiv(B, batch_tile) < 2:
        batch_tile = max(_ROW_TILE, _round_up(pl.cdiv(B, 2), _ROW_TILE))

    # Single-step grid: size the block to the (8-row-aligned) batch exactly.
    if pl.cdiv(B, batch_tile) == 1:
        batch_tile = _round_up(B, 8)

    # Never request a scoped limit below what the tile actually needs
    # (guards hand-specified oversized tiles).
    while _vmem_needed(batch_tile, input_dim, n_pad) > budget and batch_tile > 8:
        batch_tile = max(8, _round_up(batch_tile // 2, 8))

    vmem_needed = _vmem_needed(batch_tile, input_dim, n_pad)
    vmem_limit = int(min(max(2 * vmem_needed, 32 * _MIB), vmem_cap))

    grid = (pl.cdiv(B, batch_tile),)

    # Weight-side prep is tiny; x itself travels HBM->VMEM untouched (f32).
    w1_bf = jnp.asarray(w1, jnp.bfloat16)
    b1_f = jnp.asarray(b1, jnp.float32).reshape(1, HIDDEN)
    w2_bf = jnp.pad(jnp.asarray(w2, jnp.bfloat16),
                    ((0, 0), (0, n_pad - sensitive_dim)))
    b2_f = jnp.pad(jnp.asarray(b2, jnp.float32).reshape(1, sensitive_dim),
                   ((0, 0), (0, n_pad - sensitive_dim)))

    out_padded = pl.pallas_call(
        _mlp_kernel,
        out_shape=jax.ShapeDtypeStruct((B, n_pad), jnp.bfloat16),
        grid_spec=pltpu.PrefetchScalarGridSpec(
            num_scalar_prefetch=0,
            grid=grid,
            in_specs=[
                pl.BlockSpec((batch_tile, input_dim), lambda i: (i, 0)),
                pl.BlockSpec((input_dim, HIDDEN), lambda i: (0, 0)),
                pl.BlockSpec((1, HIDDEN), lambda i: (0, 0)),
                pl.BlockSpec((HIDDEN, n_pad), lambda i: (0, 0)),
                pl.BlockSpec((1, n_pad), lambda i: (0, 0)),
            ],
            out_specs=pl.BlockSpec((batch_tile, n_pad), lambda i: (i, 0)),
        ),
        compiler_params=pltpu.CompilerParams(
            dimension_semantics=("parallel",),
            vmem_limit_bytes=vmem_limit,
        ),
    )(jnp.asarray(x, jnp.float32), w1_bf, b1_f, w2_bf, b2_f)

    # Keep the PyTorch module's f32 output contract.
    return out_padded[:, :sensitive_dim].astype(jnp.float32)


def init_params(key, input_dim, sensitive_dim):
    """Deterministic init mimicking nn.Linear's uniform(-1/sqrt(fan_in), +1/sqrt(fan_in))."""
    k1, k2, k3, k4 = jax.random.split(key, 4)
    bound1 = 1.0 / jnp.sqrt(jnp.float32(input_dim))
    bound2 = 1.0 / jnp.sqrt(jnp.float32(HIDDEN))
    w1 = jax.random.uniform(k1, (input_dim, HIDDEN), jnp.float32, -bound1, bound1)
    b1 = jax.random.uniform(k2, (1, HIDDEN), jnp.float32, -bound1, bound1)
    w2 = jax.random.uniform(k3, (HIDDEN, sensitive_dim), jnp.float32, -bound2, bound2)
    b2 = jax.random.uniform(k4, (1, sensitive_dim), jnp.float32, -bound2, bound2)
    return w1, b1, w2, b2


if __name__ == "__main__":
    key = jax.random.PRNGKey(0)
    kx, kp = jax.random.split(key)

    batch = 8
    input_dim = 32
    sensitive_dim = 4

    x = jax.random.normal(kx, (batch, input_dim), jnp.float32)
    w1, b1, w2, b2 = init_params(kp, input_dim, sensitive_dim)

    out = adversarial_debiaser_forward(x, w1, b1, w2, b2)
    out = jax.block_until_ready(out)

    # Pure-JAX f32 reference; tolerance loosened for the bf16 MXU/writeback path.
    ref = jnp.maximum(x @ w1 + b1, 0.0) @ w2 + b2
    assert out.shape == (batch, sensitive_dim)
    assert out.dtype == jnp.float32
    assert jnp.allclose(out, ref, atol=5e-2, rtol=5e-2)

    print("KERNEL_OK")
</pallas_src>

<mosaic_0001>
module attributes {stable_mosaic.version = 11 : i64} {
  func.func @_mlp_kernel(%arg0: i32, %arg1: memref<8x32xf32, #tpu.memory_space<vmem>>, %arg2: memref<32x64xbf16, #tpu.memory_space<vmem>>, %arg3: memref<1x64xf32, #tpu.memory_space<vmem>>, %arg4: memref<64x128xbf16, #tpu.memory_space<vmem>>, %arg5: memref<1x128xf32, #tpu.memory_space<vmem>>, %arg6: memref<8x128xbf16, #tpu.memory_space<vmem>>) attributes {dimension_semantics = [#tpu.dimension_semantics<parallel>], iteration_bounds = array<i64: 1>, scalar_prefetch = 0 : i64, scratch_operands = 0 : i64, tpu.core_type = #tpu.core_type<tc>, window_params = [{transform_indices = @transform_0, window_bounds = array<i64: 8, 32>}, {pipeline_mode = #tpu.pipeline_mode<synchronous>, transform_indices = @transform_1, window_bounds = array<i64: 32, 64>}, {pipeline_mode = #tpu.pipeline_mode<synchronous>, transform_indices = @transform_2, window_bounds = array<i64: 1, 64>}, {pipeline_mode = #tpu.pipeline_mode<synchronous>, transform_indices = @transform_3, window_bounds = array<i64: 64, 128>}, {pipeline_mode = #tpu.pipeline_mode<synchronous>, transform_indices = @transform_4, window_bounds = array<i64: 1, 128>}, {transform_indices = @transform_5, window_bounds = array<i64: 8, 128>}]} {
    %c0 = arith.constant 0 : index
    %c0_0 = arith.constant 0 : index
    %0 = vector.load %arg1[%c0, %c0_0] : memref<8x32xf32, #tpu.memory_space<vmem>>, vector<8x32xf32>
    %1 = arith.truncf %0 : vector<8x32xf32> to vector<8x32xbf16>
    %c0_1 = arith.constant 0 : index
    %c0_2 = arith.constant 0 : index
    %2 = vector.load %arg2[%c0_1, %c0_2] : memref<32x64xbf16, #tpu.memory_space<vmem>>, vector<32x64xbf16>
    %cst = arith.constant dense<0.000000e+00> : vector<8x64xf32>
    %3 = tpu.matmul %1, %2, %cst {dimension_numbers = #tpu.dot_dimension_numbers<[1], [0], [0], [1], [0, 0, 1, 1], [], []>} : vector<8x32xbf16>, vector<32x64xbf16>, vector<8x64xf32> -> vector<8x64xf32>
    %c0_3 = arith.constant 0 : index
    %c0_4 = arith.constant 0 : index
    %4 = vector.load %arg3[%c0_3, %c0_4] : memref<1x64xf32, #tpu.memory_space<vmem>>, vector<1x64xf32>
    %5 = vector.broadcast %4 : vector<1x64xf32> to vector<8x64xf32>
    %6 = arith.addf %3, %5 : vector<8x64xf32>
    %cst_5 = arith.constant 0.000000e+00 : f32
    %7 = vector.broadcast %cst_5 : f32 to vector<8x64xf32>
    %8 = arith.maximumf %6, %7 : vector<8x64xf32>
    %9 = arith.truncf %8 : vector<8x64xf32> to vector<8x64xbf16>
    %c0_6 = arith.constant 0 : index
    %c0_7 = arith.constant 0 : index
    %10 = vector.load %arg4[%c0_6, %c0_7] : memref<64x128xbf16, #tpu.memory_space<vmem>>, vector<64x128xbf16>
    %cst_8 = arith.constant dense<0.000000e+00> : vector<8x128xf32>
    %11 = tpu.matmul %9, %10, %cst_8 {dimension_numbers = #tpu.dot_dimension_numbers<[1], [0], [0], [1], [0, 0, 1, 1], [], []>} : vector<8x64xbf16>, vector<64x128xbf16>, vector<8x128xf32> -> vector<8x128xf32>
    %c0_9 = arith.constant 0 : index
    %c0_10 = arith.constant 0 : index
    %12 = vector.load %arg5[%c0_9, %c0_10] : memref<1x128xf32, #tpu.memory_space<vmem>>, vector<1x128xf32>
    %13 = vector.broadcast %12 : vector<1x128xf32> to vector<8x128xf32>
    %14 = arith.addf %11, %13 : vector<8x128xf32>
    %15 = arith.truncf %14 : vector<8x128xf32> to vector<8x128xbf16>
    %c0_11 = arith.constant 0 : index
    %c0_12 = arith.constant 0 : index
    %16 = vector.load %arg6[%c0_11, %c0_12] : memref<8x128xbf16, #tpu.memory_space<vmem>>, vector<8x128xbf16>
    tpu.vector_store %arg6[%c0_11, %c0_12], %15 {strides = array<i32>} : memref<8x128xbf16, #tpu.memory_space<vmem>>, vector<8x128xbf16>,
    return
  }
  func.func @transform_0(%arg0: i32) -> (i32, i32) {
    %c0_i32 = arith.constant 0 : i32
    %c0_i32_0 = arith.constant 0 : i32
    return %arg0, %c0_i32 : i32, i32
  }
  func.func @transform_1(%arg0: i32) -> (i32, i32) {
    %c0_i32 = arith.constant 0 : i32
    %c0_i32_0 = arith.constant 0 : i32
    %c0_i32_1 = arith.constant 0 : i32
    return %c0_i32, %c0_i32_0 : i32, i32
  }
  func.func @transform_2(%arg0: i32) -> (i32, i32) {
    %c0_i32 = arith.constant 0 : i32
    %c0_i32_0 = arith.constant 0 : i32
    %c0_i32_1 = arith.constant 0 : i32
    return %c0_i32, %c0_i32_0 : i32, i32
  }
  func.func @transform_3(%arg0: i32) -> (i32, i32) {
    %c0_i32 = arith.constant 0 : i32
    %c0_i32_0 = arith.constant 0 : i32
    %c0_i32_1 = arith.constant 0 : i32
    return %c0_i32, %c0_i32_0 : i32, i32
  }
  func.func @transform_4(%arg0: i32) -> (i32, i32) {
    %c0_i32 = arith.constant 0 : i32
    %c0_i32_0 = arith.constant 0 : i32
    %c0_i32_1 = arith.constant 0 : i32
    return %c0_i32, %c0_i32_0 : i32, i32
  }
  func.func @transform_5(%arg0: i32) -> (i32, i32) {
    %c0_i32 = arith.constant 0 : i32
    %c0_i32_0 = arith.constant 0 : i32
    return %arg0, %c0_i32 : i32, i32
  }
}

</mosaic_0001>

<llo_original>
// kernel: tpu_custom_call.1
$region0: #{tpu_custom_call.1}
  #allocation0 [shape = 'u32[]', space=smem, size = 0x4, offset = 0x4, fixed_abs, tag = 'smem constant byte address 0x4 - core index']
  #allocation1 [shape = 'u32[144,128]{1,0:T(1,128)}', space=vmem, size = 0x12000, scoped, tag = 'internal scratch']
  %s0 = inlined_call_operand.hbm [shape: f32[8,32], index: 0, kind: input, shape index: {}]
  %s1 = inlined_call_operand.hbm [shape: bf16[32,64], index: 1, kind: input, shape index: {}]
  %s2 = inlined_call_operand.vmem [shape: f32[1,64], index: 2, kind: input, shape index: {}]
  %s3 = inlined_call_operand.hbm [shape: bf16[64,128], index: 3, kind: input, shape index: {}]
  %s4 = inlined_call_operand.vmem [shape: f32[1,128], index: 4, kind: input, shape index: {}]
  %s5 = inlined_call_operand.hbm [shape: bf16[8,128], index: 5, kind: output, shape index: {}]
  %s6 = sld [smem:[#allocation0]]
  $region42: #{tpu_custom_call.1} parent=0
    _
  %s8 = ssub.s32 1, %s6
  %s9 = scalar_select 0, %s8, %s6
  $region1: #{tpu_custom_call.1} parent=0
    #allocation2 [shape = 'u8[4096]{0}', space=vmem, size = 0x1000, scoped, tag = 'input window, operand 0, single buffered']
    #allocation3 [shape = 's32[1]{0}', space=sflag, size = 0x4, scoped, tag = 'scoped memory for tpu_custom_call.1']
    #allocation4 [shape = 's32[1]{0}', space=sflag, size = 0x4, scoped, tag = 'scoped memory for tpu_custom_call.1']
    #allocation5 [shape = 'u8[8192]{0}', space=vmem, size = 0x2000, scoped, tag = 'input window, operand 1, single buffered']
    #allocation6 [shape = 's32[1]{0}', space=sflag, size = 0x4, scoped, tag = 'scoped memory for tpu_custom_call.1']
    #allocation7 [shape = 'u8[16384]{0}', space=vmem, size = 0x4000, scoped, tag = 'input window, operand 3, single buffered']
    #allocation8 [shape = 'u8[2048]{0}', space=vmem, size = 0x800, scoped, tag = 'output window, operand 0, single buffered']
    %10 = vsyncpa [#allocation3], 0
    %11 = vsyncpa [#allocation6], 0
    %12 = vsyncpa [#allocation4], 0
    // Predicated region
    $region2: #{tpu_custom_call.1} parent=1 // pred_check
      _
    $region3: #{tpu_custom_call.1} parent=1 // pred_check_branch
      %14 = sbr.rel (0) target = $region5
    $region4: #{tpu_custom_call.1} parent=1 // pred_region
      %s16 = ssub.s32 128, 128
      %17 = vsyncadd [#allocation3], %s16
      %s19 = sshll.u32 [#allocation2], 4
      %s20 = int_to_ptr.vmem [resolvable:$true] %s19
      %22 = dma.hbm_to_vmem [thread:$0]  %s0, 128, %s20, [#allocation3]
    $region5: #{tpu_custom_call.1} parent=1 // pred_fallthru
      _
    // Predicated region
    $region6: #{tpu_custom_call.1} parent=1 // pred_check
      _
    $region7: #{tpu_custom_call.1} parent=1 // pred_check_branch
      %24 = sbr.rel (0) target = $region9
    $region8: #{tpu_custom_call.1} parent=1 // pred_region
      %s26 = ssub.s32 256, 256
      %27 = vsyncadd [#allocation6], %s26
      %s28 = sshll.u32 [#allocation5], 4
      %s29 = int_to_ptr.vmem [resolvable:$true] %s28
      %34 = dma.hbm_to_vmem [thread:$0]  %s1, 256, %s29, [#allocation6], 64, 64, 4
    $region9: #{tpu_custom_call.1} parent=1 // pred_fallthru
      _
    // Predicated region
    $region10: #{tpu_custom_call.1} parent=1 // pred_check
      _
    $region11: #{tpu_custom_call.1} parent=1 // pred_check_branch
      %36 = sbr.rel (0) target = $region13
    $region12: #{tpu_custom_call.1} parent=1 // pred_region
      _
    $region13: #{tpu_custom_call.1} parent=1 // pred_fallthru
      _
    // Predicated region
    $region14: #{tpu_custom_call.1} parent=1 // pred_check
      _
    $region15: #{tpu_custom_call.1} parent=1 // pred_check_branch
      %38 = sbr.rel (0) target = $region17
    $region16: #{tpu_custom_call.1} parent=1 // pred_region
      %s40 = ssub.s32 512, 512
      %41 = vsyncadd [#allocation6], %s40
      %s42 = sshll.u32 [#allocation7], 4
      %s43 = int_to_ptr.vmem [resolvable:$true] %s42
      %48 = dma.hbm_to_vmem [thread:$0]  %s3, 512, %s43, [#allocation6], 64, 64, 4
    $region17: #{tpu_custom_call.1} parent=1 // pred_fallthru
      _
    // Predicated region
    $region18: #{tpu_custom_call.1} parent=1 // pred_check
      _
    $region19: #{tpu_custom_call.1} parent=1 // pred_check_branch
      %50 = sbr.rel (0) target = $region21
    $region20: #{tpu_custom_call.1} parent=1 // pred_region
      _
    $region21: #{tpu_custom_call.1} parent=1 // pred_fallthru
      _
    // Predicated region
    $region22: #{tpu_custom_call.1} parent=1 // pred_check
      _
    $region23: #{tpu_custom_call.1} parent=1 // pred_check_branch
      %52 = sbr.rel (0) target = $region25
    $region24: #{tpu_custom_call.1} parent=1 // pred_region
      %53 = dma.done [#allocation3], 128
    $region25: #{tpu_custom_call.1} parent=1 // pred_fallthru
      _
    // Predicated region
    $region26: #{tpu_custom_call.1} parent=1 // pred_check
      _
    $region27: #{tpu_custom_call.1} parent=1 // pred_check_branch
      %55 = sbr.rel (0) target = $region29
    $region28: #{tpu_custom_call.1} parent=1 // pred_region
      %56 = dma.done [#allocation6], 256
    $region29: #{tpu_custom_call.1} parent=1 // pred_fallthru
      _
    // Predicated region
    $region30: #{tpu_custom_call.1} parent=1 // pred_check
      _
    $region31: #{tpu_custom_call.1} parent=1 // pred_check_branch
      %58 = sbr.rel (0) target = $region33
    $region32: #{tpu_custom_call.1} parent=1 // pred_region
      %59 = dma.done [#allocation6], 512
    $region33: #{tpu_custom_call.1} parent=1 // pred_fallthru
      _
    %v61 = vld [vmem:[#allocation2] sm:$0xff]
    %v62 = vpack.c.bf16 %v61, %v61
    %v63 = vld [vmem:[#allocation5] sm:$0xf]
    %v64 = vld [vmem:[#allocation5 + $0x4] sm:$0xf]
    %v65 = vld [vmem:[#allocation5 + $0x8] sm:$0xf]
    %v66 = vld [vmem:[#allocation5 + $0xc] sm:$0xf]
    %v67 = vld [vmem:[%s2] sm:$0x1]
    %v69 = vlaneseq
    %v70 = vshrl.u32 %v69, 7
    %v71 = vsub.s32 0, %v70
    %v72 = vrot.slane %v67, %v71
    %v78 = vunpack.c.l.b16 %v63
    %v79 = vunpack.c.l.b16 %v64
    %v80 = vunpack.c.l.b16 %v65
    %v81 = vunpack.c.l.b16 %v66
    %v82 = vpack.c.b16 %v79, %v78
    %v83 = vpack.c.b16 %v81, %v80
    %vm86 = vcmask 261120
    %v88 = vsel %vm86, %v62, 0
    %90 = vmatprep.subr.bf16.mxu0 0
    %91 = vmatpush1.bf16.msra.mxu0 0
    %92 = vmatprep.subr.bf16.mxu0 0
    %93 = vmatpush1.bf16.msra.mxu0 0
    %94 = vmatprep.subr.bf16.mxu0 0
    %95 = vmatpush1.bf16.msra.mxu0 0
    %96 = vmatprep.subr.bf16.mxu0 0
    %97 = vmatpush1.bf16.msra.mxu0 0
    %98 = vmatprep.subr.bf16.mxu0 0
    %99 = vmatpush1.bf16.msra.mxu0 0
    %100 = vmatprep.subr.bf16.mxu0 0
    %101 = vmatpush1.bf16.msra.mxu0 0
    %102 = vmatprep.subr.bf16.mxu0 0
    %103 = vmatpush1.bf16.msra.mxu0 %v83
    %104 = vmatprep.subr.bf16.mxu0 0
    %105 = vmatpush1.bf16.msra.mxu0 %v82
    %106 = vmatprep.subr.bf16.mxu0 0
    %107 = vmatpush2.bf16.msra.mxu0 0
    %108 = vmatprep.subr.bf16.mxu0 0
    %109 = vmatpush2.bf16.msra.mxu0 0
    %110 = vmatprep.subr.bf16.mxu0 0
    %111 = vmatpush2.bf16.msra.mxu0 0
    %112 = vmatprep.subr.bf16.mxu0 0
    %113 = vmatpush2.bf16.msra.mxu0 0
    %114 = vmatprep.subr.bf16.mxu0 0
    %115 = vmatpush2.bf16.msra.mxu0 0
    %116 = vmatprep.subr.bf16.mxu0 0
    %117 = vmatpush2.bf16.msra.mxu0 0
    %118 = vmatprep.subr.bf16.mxu0 0
    %119 = vmatpush2.bf16.msra.mxu0 0
    %120 = vmatprep.subr.bf16.mxu0 0
    %121 = vmatpush2.bf16.msra.mxu0 0
    %122 = vmatprep.mubr.bf16.mxu0 0
    %123 = vmatmul.mubr.bf16.gmra.mxu0 %v88
    %v124 = vpop.f32.mrf.mxu0
    %v125 = vadd.f32 %v72, %v124
    %v126 = vpop.f32.mrf.mxu0
    %v127 = vpop.f32.mrf.mxu0
    %v128 = vpop.f32.mrf.mxu0
    %129 = vdwg.mxu0
    %v130 = vmax.f32 %v125, 0.0
    %v131 = vpack.c.bf16 %v130, %v130
    %v132 = vld [vmem:[#allocation7] sm:$0xf]
    %v133 = vld [vmem:[#allocation7 + $0x4] sm:$0xf]
    %v134 = vld [vmem:[#allocation7 + $0x8] sm:$0xf]
    %v135 = vld [vmem:[#allocation7 + $0xc] sm:$0xf]
    %v136 = vld [vmem:[#allocation7 + $0x10] sm:$0xf]
    %v137 = vld [vmem:[#allocation7 + $0x14] sm:$0xf]
    %v138 = vld [vmem:[#allocation7 + $0x18] sm:$0xf]
    %v139 = vld [vmem:[#allocation7 + $0x1c] sm:$0xf]
    %v140 = vld [vmem:[%s4] sm:$0x1]
    %v142 = vlaneseq
    %v143 = vshrl.u32 %v142, 7
    %v144 = vsub.s32 0, %v143
    %v145 = vrot.slane %v140, %v144
    %v155 = vunpack.c.l.b16 %v132
    %v156 = vunpack.c.l.b16 %v133
    %v157 = vunpack.c.l.b16 %v134
    %v158 = vunpack.c.l.b16 %v135
    %v159 = vunpack.c.l.b16 %v136
    %v160 = vunpack.c.l.b16 %v137
    %v161 = vunpack.c.l.b16 %v138
    %v162 = vunpack.c.l.b16 %v139
    %v163 = vpack.c.b16 %v156, %v155
    %v164 = vpack.c.b16 %v158, %v157
    %v165 = vpack.c.b16 %v160, %v159
    %v166 = vpack.c.b16 %v162, %v161
    %vm171 = vcmask 523264
    %v173 = vsel %vm171, %v131, 0
    %175 = vmatprep.subr.bf16.mxu0 0
    %176 = vmatpush1.bf16.msra.mxu0 0
    %177 = vmatprep.subr.bf16.mxu0 0
    %178 = vmatpush1.bf16.msra.mxu0 0
    %179 = vmatprep.subr.bf16.mxu0 0
    %180 = vmatpush1.bf16.msra.mxu0 0
    %181 = vmatprep.subr.bf16.mxu0 0
    %182 = vmatpush1.bf16.msra.mxu0 0
    %183 = vmatprep.subr.bf16.mxu0 0
    %184 = vmatpush1.bf16.msra.mxu0 %v166
    %185 = vmatprep.subr.bf16.mxu0 0
    %186 = vmatpush1.bf16.msra.mxu0 %v165
    %187 = vmatprep.subr.bf16.mxu0 0
    %188 = vmatpush1.bf16.msra.mxu0 %v164
    %189 = vmatprep.subr.bf16.mxu0 0
    %190 = vmatpush1.bf16.msra.mxu0 %v163
    %191 = vmatprep.subr.bf16.mxu0 0
    %192 = vmatpush2.bf16.msra.mxu0 0
    %193 = vmatprep.subr.bf16.mxu0 0
    %194 = vmatpush2.bf16.msra.mxu0 0
    %195 = vmatprep.subr.bf16.mxu0 0
    %196 = vmatpush2.bf16.msra.mxu0 0
    %197 = vmatprep.subr.bf16.mxu0 0
    %198 = vmatpush2.bf16.msra.mxu0 0
    %199 = vmatprep.subr.bf16.mxu0 0
    %200 = vmatpush2.bf16.msra.mxu0 0
    %201 = vmatprep.subr.bf16.mxu0 0
    %202 = vmatpush2.bf16.msra.mxu0 0
    %203 = vmatprep.subr.bf16.mxu0 0
    %204 = vmatpush2.bf16.msra.mxu0 0
    %205 = vmatprep.subr.bf16.mxu0 0
    %206 = vmatpush2.bf16.msra.mxu0 0
    %207 = vmatprep.mubr.bf16.mxu0 0
    %208 = vmatmul.mubr.bf16.gmra.mxu0 %v173
    %v209 = vpop.f32.mrf.mxu0
    %v210 = vadd.f32 %v145, %v209
    %v211 = vpop.f32.mrf.mxu0
    %v212 = vpop.f32.mrf.mxu0
    %v213 = vpop.f32.mrf.mxu0
    %214 = vdwg.mxu0
    %v215 = vpack.c.bf16 %v210, %v210
    %216 = vst [vmem:[#allocation8] sm:$0xf] %v215
    // Predicated region
    $region34: #{tpu_custom_call.1} parent=1 // pred_check
      _
    $region35: #{tpu_custom_call.1} parent=1 // pred_check_branch
      %218 = sbr.rel (0) target = $region37
    $region36: #{tpu_custom_call.1} parent=1 // pred_region
      %s220 = ssub.s32 64, 64
      %221 = vsyncadd [#allocation4], %s220
      %s223 = sshll.u32 [#allocation8], 4
      %s224 = int_to_ptr.vmem [resolvable:$true] %s223
      %226 = dma.vmem_to_hbm [thread:$0]  %s224, 64, %s5, [#allocation4]
    $region37: #{tpu_custom_call.1} parent=1 // pred_fallthru
      _
    // Predicated region
    $region38: #{tpu_custom_call.1} parent=1 // pred_check
      _
    $region39: #{tpu_custom_call.1} parent=1 // pred_check_branch
      %228 = sbr.rel (0) target = $region41
    $region40: #{tpu_custom_call.1} parent=1 // pred_region
      %229 = dma.done [#allocation4], 64
    $region41: #{tpu_custom_call.1} parent=1 // pred_fallthru
      _
    %230 = vsyncpa [#allocation3], 1
    %231 = vsyncpa [#allocation6], 1
    %232 = vsyncpa [#allocation4], 1

</llo_original>
